<compile_context>
chip_gen: v5e
topology: v5e:2x2
jax: 0.10.0
libtpu: 0.0.40
codegen_flags: <defaults>
</compile_context>

<pallas_src>
import jax
import jax.numpy as jnp
import numpy as np
from jax.experimental import pallas as pl
from jax.experimental.pallas import tpu as pltpu


def _make_in_swap_kernel(s_valid, s_pad):
    """Build the kernel closed over the true spatial size (static)."""
    inv_n = 1.0 / float(s_valid)
    inv_nm1 = 1.0 / float(max(s_valid - 1, 1))  # unbiased (ddof=1), like torch
    needs_mask = s_pad != s_valid

    def kernel(a_ref, b_ref, oa_ref, ob_ref):
        a = a_ref[...].astype(jnp.float32)
        b = b_ref[...].astype(jnp.float32)

        # Padded lanes are zero in the input, so the plain sum already equals
        # the sum over valid lanes.
        mean_a = jnp.sum(a, axis=-1, keepdims=True) * inv_n
        mean_b = jnp.sum(b, axis=-1, keepdims=True) * inv_n

        # Centered tensors: reused for both the variance sum and the output.
        ca = a - mean_a
        cb = b - mean_b

        if needs_mask:
            # Padded lanes of `ca`/`cb` are (-mean); exclude them from the
            # variance reduction.
            lane = jax.lax.broadcasted_iota(jnp.int32, a.shape, a.ndim - 1)
            mask = lane < s_valid
            ca_v = jnp.where(mask, ca, 0.0)
            cb_v = jnp.where(mask, cb, 0.0)
        else:
            ca_v, cb_v = ca, cb

        std_a = jnp.sqrt(jnp.sum(ca_v * ca_v, axis=-1, keepdims=True) * inv_nm1)
        std_b = jnp.sqrt(jnp.sum(cb_v * cb_v, axis=-1, keepdims=True) * inv_nm1)

        # Fold the normalization divide into one per-row scale: a tiny (tr, 1)
        # divide instead of a full-tile divide + extra full-tile multiply.
        scale_ab = std_b / (std_a + 1e-5)
        scale_ba = std_a / (std_b + 1e-5)

        oa_ref[...] = (ca * scale_ab + mean_b).astype(oa_ref.dtype)
        ob_ref[...] = (cb * scale_ba + mean_a).astype(ob_ref.dtype)

    return kernel


def color_aug(A, B):
    """ColorAug forward (norm_type='in', p=1.0). A, B: (N, C, H, W)."""
    assert A.shape == B.shape and A.dtype == B.dtype
    N, C, H, W = A.shape
    R, S = N * C, H * W

    itemsize = jnp.dtype(A.dtype).itemsize

    # Lane-dense spatial axis: pad H*W up to a multiple of 128.
    S_pad = -(-S // 128) * 128

    # Row tile: target ~2 MiB per input block so that
    #   4 arrays x 2 pipeline buffers x 2 MiB = 16 MiB
    # of blocks fits the scoped VMEM budget on all generations (incl. v7x's
    # 64 MiB physical VMEM) while amortizing per-grid-step overhead.
    target_block_bytes = 2 * 1024 * 1024
    tr = max(8, (target_block_bytes // (S_pad * itemsize)) // 8 * 8)
    R_pad8 = -(-R // 8) * 8
    tr = min(tr, R_pad8)

    # Pad rows up to a multiple of the tile (never a full-extent fallback).
    R_pad = -(-R // tr) * tr

    a2 = A.reshape(R, S)
    b2 = B.reshape(R, S)
    if (R_pad, S_pad) != (R, S):
        a2 = jnp.pad(a2, ((0, R_pad - R), (0, S_pad - S)))
        b2 = jnp.pad(b2, ((0, R_pad - R), (0, S_pad - S)))

    grid = (R_pad // tr,)
    row_spec = pl.BlockSpec((tr, S_pad), lambda i: (i, 0))

    cost = pl.CostEstimate(
        flops=12 * R_pad * S_pad,
        transcendentals=2 * R_pad,
        bytes_accessed=4 * R_pad * S_pad * itemsize,
    )

    out_a, out_b = pl.pallas_call(
        _make_in_swap_kernel(S, S_pad),
        grid_spec=pltpu.PrefetchScalarGridSpec(
            num_scalar_prefetch=0,
            grid=grid,
            in_specs=[row_spec, row_spec],
            out_specs=(row_spec, row_spec),
        ),
        out_shape=(
            jax.ShapeDtypeStruct((R_pad, S_pad), A.dtype),
            jax.ShapeDtypeStruct((R_pad, S_pad), B.dtype),
        ),
        compiler_params=pltpu.CompilerParams(
            # One independent grid axis: marked parallel so it shards across
            # both TensorCores on v7x (megacore) and pipelines on v5e/v6e.
            dimension_semantics=("parallel",),
            # Back the ~16 MiB of double-buffered blocks on every generation
            # (default scoped VMEM is only 16 MiB on v5e).
            vmem_limit_bytes=48 * 1024 * 1024,
        ),
        cost_estimate=cost,
    )(a2, b2)

    out_a = out_a[:R, :S].reshape(N, C, H, W)
    out_b = out_b[:R, :S].reshape(N, C, H, W)
    return out_a, out_b


def _reference(A, B):
    """Pure-JAX reference mirroring the PyTorch IN() function."""
    def stats(X):
        mean = jnp.mean(X, axis=(2, 3), keepdims=True)
        var = jnp.sum((X - mean) ** 2, axis=(2, 3), keepdims=True) / (
            X.shape[2] * X.shape[3] - 1
        )
        return jnp.sqrt(var), mean

    std_a, mean_a = stats(A)
    std_b, mean_b = stats(B)
    norm_a = (A - mean_a) / (std_a + 1e-5)
    norm_b = (B - mean_b) / (std_b + 1e-5)
    return norm_a * std_b + mean_b, norm_b * std_a + mean_a


def _check(A, B):
    out_A, out_B = color_aug(A, B)
    out_A = jax.block_until_ready(out_A)
    out_B = jax.block_until_ready(out_B)
    ref_A, ref_B = _reference(A, B)
    np.testing.assert_allclose(np.asarray(out_A), np.asarray(ref_A),
                               rtol=1e-5, atol=1e-5)
    np.testing.assert_allclose(np.asarray(out_B), np.asarray(ref_B),
                               rtol=1e-5, atol=1e-5)


if __name__ == "__main__":
    key = jax.random.PRNGKey(0)
    ka, kb, kc, kd = jax.random.split(key, 4)

    # Aligned case: H*W = 256 (lane multiple), N*C = 8 (sublane multiple).
    N, C, H, W = 2, 4, 16, 16
    A = jax.random.normal(ka, (N, C, H, W), dtype=jnp.float32) * 2.0 + 0.5
    B = jax.random.normal(kb, (N, C, H, W), dtype=jnp.float32) * 0.7 - 1.3
    _check(A, B)

    # Ragged case: exercises the row/lane padding + masked variance path.
    N2, C2, H2, W2 = 1, 3, 10, 10
    A2 = jax.random.normal(kc, (N2, C2, H2, W2), dtype=jnp.float32) * 1.5 - 0.2
    B2 = jax.random.normal(kd, (N2, C2, H2, W2), dtype=jnp.float32) * 0.4 + 0.9
    _check(A2, B2)

    print("KERNEL_OK")
</pallas_src>

<mosaic_0001>
module attributes {stable_mosaic.version = 11 : i64} {
  func.func @kernel(%arg0: i32, %arg1: memref<8x256xf32, #tpu.memory_space<vmem>>, %arg2: memref<8x256xf32, #tpu.memory_space<vmem>>, %arg3: memref<8x256xf32, #tpu.memory_space<vmem>>, %arg4: memref<8x256xf32, #tpu.memory_space<vmem>>) attributes {dimension_semantics = [#tpu.dimension_semantics<parallel>], iteration_bounds = array<i64: 1>, scalar_prefetch = 0 : i64, scratch_operands = 0 : i64, tpu.core_type = #tpu.core_type<tc>, window_params = [{transform_indices = @transform_0, window_bounds = array<i64: 8, 256>}, {transform_indices = @transform_1, window_bounds = array<i64: 8, 256>}, {transform_indices = @transform_2, window_bounds = array<i64: 8, 256>}, {transform_indices = @transform_3, window_bounds = array<i64: 8, 256>}]} {
    %c0 = arith.constant 0 : index
    %c0_0 = arith.constant 0 : index
    %0 = vector.load %arg1[%c0, %c0_0] : memref<8x256xf32, #tpu.memory_space<vmem>>, vector<8x256xf32>
    %c0_1 = arith.constant 0 : index
    %c0_2 = arith.constant 0 : index
    %1 = vector.load %arg2[%c0_1, %c0_2] : memref<8x256xf32, #tpu.memory_space<vmem>>, vector<8x256xf32>
    %cst = arith.constant dense<0.000000e+00> : vector<8xf32>
    %2 = vector.multi_reduction <add>, %0, %cst [1] : vector<8x256xf32> to vector<8xf32>
    %3 = vector.shape_cast %2 : vector<8xf32> to vector<8x1xf32>
    %cst_3 = arith.constant 3.906250e-03 : f32
    %4 = vector.broadcast %cst_3 : f32 to vector<8x1xf32>
    %5 = arith.mulf %3, %4 : vector<8x1xf32>
    %cst_4 = arith.constant dense<0.000000e+00> : vector<8xf32>
    %6 = vector.multi_reduction <add>, %1, %cst_4 [1] : vector<8x256xf32> to vector<8xf32>
    %7 = vector.shape_cast %6 : vector<8xf32> to vector<8x1xf32>
    %cst_5 = arith.constant 3.906250e-03 : f32
    %8 = vector.broadcast %cst_5 : f32 to vector<8x1xf32>
    %9 = arith.mulf %7, %8 : vector<8x1xf32>
    %10 = vector.broadcast %5 : vector<8x1xf32> to vector<8x256xf32>
    %11 = arith.subf %0, %10 : vector<8x256xf32>
    %12 = vector.broadcast %9 : vector<8x1xf32> to vector<8x256xf32>
    %13 = arith.subf %1, %12 : vector<8x256xf32>
    %14 = arith.mulf %11, %11 : vector<8x256xf32>
    %cst_6 = arith.constant dense<0.000000e+00> : vector<8xf32>
    %15 = vector.multi_reduction <add>, %14, %cst_6 [1] : vector<8x256xf32> to vector<8xf32>
    %16 = vector.shape_cast %15 : vector<8xf32> to vector<8x1xf32>
    %cst_7 = arith.constant 0.00392156886 : f32
    %17 = vector.broadcast %cst_7 : f32 to vector<8x1xf32>
    %18 = arith.mulf %16, %17 : vector<8x1xf32>
    %19 = math.sqrt %18 : vector<8x1xf32>
    %20 = arith.mulf %13, %13 : vector<8x256xf32>
    %cst_8 = arith.constant dense<0.000000e+00> : vector<8xf32>
    %21 = vector.multi_reduction <add>, %20, %cst_8 [1] : vector<8x256xf32> to vector<8xf32>
    %22 = vector.shape_cast %21 : vector<8xf32> to vector<8x1xf32>
    %cst_9 = arith.constant 0.00392156886 : f32
    %23 = vector.broadcast %cst_9 : f32 to vector<8x1xf32>
    %24 = arith.mulf %22, %23 : vector<8x1xf32>
    %25 = math.sqrt %24 : vector<8x1xf32>
    %cst_10 = arith.constant 9.99999974E-6 : f32
    %26 = vector.broadcast %cst_10 : f32 to vector<8x1xf32>
    %27 = arith.addf %19, %26 : vector<8x1xf32>
    %28 = arith.divf %25, %27 : vector<8x1xf32>
    %cst_11 = arith.constant 9.99999974E-6 : f32
    %29 = vector.broadcast %cst_11 : f32 to vector<8x1xf32>
    %30 = arith.addf %25, %29 : vector<8x1xf32>
    %31 = arith.divf %19, %30 : vector<8x1xf32>
    %32 = vector.broadcast %28 : vector<8x1xf32> to vector<8x256xf32>
    %33 = arith.mulf %11, %32 : vector<8x256xf32>
    %34 = vector.broadcast %9 : vector<8x1xf32> to vector<8x256xf32>
    %35 = arith.addf %33, %34 : vector<8x256xf32>
    %c0_12 = arith.constant 0 : index
    %c0_13 = arith.constant 0 : index
    %36 = vector.load %arg3[%c0_12, %c0_13] : memref<8x256xf32, #tpu.memory_space<vmem>>, vector<8x256xf32>
    tpu.vector_store %arg3[%c0_12, %c0_13], %35 {strides = array<i32>} : memref<8x256xf32, #tpu.memory_space<vmem>>, vector<8x256xf32>,
    %37 = vector.broadcast %31 : vector<8x1xf32> to vector<8x256xf32>
    %38 = arith.mulf %13, %37 : vector<8x256xf32>
    %39 = vector.broadcast %5 : vector<8x1xf32> to vector<8x256xf32>
    %40 = arith.addf %38, %39 : vector<8x256xf32>
    %c0_14 = arith.constant 0 : index
    %c0_15 = arith.constant 0 : index
    %41 = vector.load %arg4[%c0_14, %c0_15] : memref<8x256xf32, #tpu.memory_space<vmem>>, vector<8x256xf32>
    tpu.vector_store %arg4[%c0_14, %c0_15], %40 {strides = array<i32>} : memref<8x256xf32, #tpu.memory_space<vmem>>, vector<8x256xf32>,
    return
  }
  func.func @transform_0(%arg0: i32) -> (i32, i32) {
    %c0_i32 = arith.constant 0 : i32
    %c0_i32_0 = arith.constant 0 : i32
    return %arg0, %c0_i32 : i32, i32
  }
  func.func @transform_1(%arg0: i32) -> (i32, i32) {
    %c0_i32 = arith.constant 0 : i32
    %c0_i32_0 = arith.constant 0 : i32
    return %arg0, %c0_i32 : i32, i32
  }
  func.func @transform_2(%arg0: i32) -> (i32, i32) {
    %c0_i32 = arith.constant 0 : i32
    %c0_i32_0 = arith.constant 0 : i32
    return %arg0, %c0_i32 : i32, i32
  }
  func.func @transform_3(%arg0: i32) -> (i32, i32) {
    %c0_i32 = arith.constant 0 : i32
    %c0_i32_0 = arith.constant 0 : i32
    return %arg0, %c0_i32 : i32, i32
  }
}

</mosaic_0001>

<llo_original>
// kernel: tpu_custom_call.1
$region0: #{tpu_custom_call.1}
  #allocation0 [shape = 'u32[]', space=smem, size = 0x4, offset = 0x4, fixed_abs, tag = 'smem constant byte address 0x4 - core index']
  #allocation1 [shape = 'u32[72,128]{1,0:T(1,128)}', space=vmem, size = 0x9000, scoped, tag = 'internal scratch']
  %s0 = inlined_call_operand.hbm [shape: f32[8,256], index: 0, kind: input, shape index: {}]
  %s1 = inlined_call_operand.hbm [shape: f32[8,256], index: 1, kind: input, shape index: {}]
  %s2 = inlined_call_operand.hbm [shape: f32[8,256], index: 2, kind: output, shape index: {0}]
  %s3 = inlined_call_operand.hbm [shape: f32[8,256], index: 3, kind: output, shape index: {1}]
  %4 = xla_tuple %s2, %s3
  %s5 = sld [smem:[#allocation0]]
  $region34: #{tpu_custom_call.1} parent=0
    _
  %s7 = ssub.s32 1, %s5
  %s8 = scalar_select 0, %s7, %s5
  $region1: #{tpu_custom_call.1} parent=0
    #allocation2 [shape = 'u8[8192]{0}', space=vmem, size = 0x2000, scoped, tag = 'input window, operand 0, single buffered']
    #allocation3 [shape = 's32[1]{0}', space=sflag, size = 0x4, scoped, tag = 'scoped memory for tpu_custom_call.1']
    #allocation4 [shape = 's32[1]{0}', space=sflag, size = 0x4, scoped, tag = 'scoped memory for tpu_custom_call.1']
    #allocation5 [shape = 'u8[8192]{0}', space=vmem, size = 0x2000, scoped, tag = 'input window, operand 1, single buffered']
    #allocation6 [shape = 's32[1]{0}', space=sflag, size = 0x4, scoped, tag = 'scoped memory for tpu_custom_call.1']
    #allocation7 [shape = 'u8[8192]{0}', space=vmem, size = 0x2000, scoped, tag = 'output window, operand 0, single buffered']
    #allocation8 [shape = 'u8[8192]{0}', space=vmem, size = 0x2000, scoped, tag = 'output window, operand 1, single buffered']
    #allocation9 [shape = 's32[1]{0}', space=sflag, size = 0x4, scoped, tag = 'scoped memory for tpu_custom_call.1']
    %9 = vsyncpa [#allocation3], 0
    %10 = vsyncpa [#allocation6], 0
    %11 = vsyncpa [#allocation4], 0
    %12 = vsyncpa [#allocation9], 0
    // Predicated region
    $region2: #{tpu_custom_call.1} parent=1 // pred_check
      _
    $region3: #{tpu_custom_call.1} parent=1 // pred_check_branch
      %14 = sbr.rel (0) target = $region5
    $region4: #{tpu_custom_call.1} parent=1 // pred_region
      %16 = vsyncadd [#allocation3], 0
      %s18 = sshll.u32 %s0, 4
      %s19 = int_to_ptr.hbm [resolvable:$true] %s18
      %s20 = sshll.u32 [#allocation2], 4
      %s21 = int_to_ptr.vmem [resolvable:$true] %s20
      %23 = dma.hbm_to_vmem [thread:$0]  %s19, 256, %s21, [#allocation3]
    $region5: #{tpu_custom_call.1} parent=1 // pred_fallthru
      _
    // Predicated region
    $region6: #{tpu_custom_call.1} parent=1 // pred_check
      _
    $region7: #{tpu_custom_call.1} parent=1 // pred_check_branch
      %25 = sbr.rel (0) target = $region9
    $region8: #{tpu_custom_call.1} parent=1 // pred_region
      %27 = vsyncadd [#allocation6], 0
      %s29 = sshll.u32 %s1, 4
      %s30 = int_to_ptr.hbm [resolvable:$true] %s29
      %s31 = sshll.u32 [#allocation5], 4
      %s32 = int_to_ptr.vmem [resolvable:$true] %s31
      %34 = dma.hbm_to_vmem [thread:$0]  %s30, 256, %s32, [#allocation6]
    $region9: #{tpu_custom_call.1} parent=1 // pred_fallthru
      _
    // Predicated region
    $region10: #{tpu_custom_call.1} parent=1 // pred_check
      _
    $region11: #{tpu_custom_call.1} parent=1 // pred_check_branch
      %36 = sbr.rel (0) target = $region13
    $region12: #{tpu_custom_call.1} parent=1 // pred_region
      %38 = dma.done [#allocation3], 256
    $region13: #{tpu_custom_call.1} parent=1 // pred_fallthru
      _
    // Predicated region
    $region14: #{tpu_custom_call.1} parent=1 // pred_check
      _
    $region15: #{tpu_custom_call.1} parent=1 // pred_check_branch
      %40 = sbr.rel (0) target = $region17
    $region16: #{tpu_custom_call.1} parent=1 // pred_region
      %42 = dma.done [#allocation6], 256
    $region17: #{tpu_custom_call.1} parent=1 // pred_fallthru
      _
    %v43 = vld [vmem:[#allocation2] sm:$0xff]
    %v44 = vld [vmem:[#allocation2 + $0x8] sm:$0xff]
    %v45 = vld [vmem:[#allocation5] sm:$0xff]
    %v46 = vld [vmem:[#allocation5 + $0x8] sm:$0xff]
    %v47 = vadd.f32 %v43, %v44
    %48 = vadd.xlane.f32.xlu0 %v47
    %v49 = vpop.xlane.xlu0 %48
    %v50 = vmul.f32 %v49, 0.00390625
    %v51 = vadd.f32 %v45, %v46
    %52 = vadd.xlane.f32.xlu0 %v51
    %v53 = vpop.xlane.xlu0 %52
    %v54 = vmul.f32 %v53, 0.00390625
    %v55 = vsub.f32 %v43, %v50
    %v56 = vsub.f32 %v44, %v50
    %v57 = vsub.f32 %v45, %v54
    %v58 = vsub.f32 %v46, %v54
    %v59 = vmul.f32 %v55, %v55
    %v60 = vmul.f32 %v56, %v56
    %v61 = vadd.f32 %v59, %v60
    %62 = vadd.xlane.f32.xlu0 %v61
    %v63 = vpop.xlane.xlu0 %62
    %v64 = vmul.f32 %v63, 0.003921569
    %v65 = vrsqrt.pop %v64
    %v66 = vmul.f32 %v65, %v64
    %v67 = vmul.f32 %v66, %v65
    %v68 = vmul.f32 0.5, %v67
    %v69 = vsub.f32 1.5, %v68
    %v70 = vmul.f32 %v65, %v69
    %v71 = vmul.f32 %v64, %v70
    %vm72 = vcmp.eq.f32.partialorder %v64, inf
    %v73 = vsel %vm72, %v64, %v71
    %vm74 = vcmp.eq.f32.partialorder %v64, 0.0
    %v75 = vand.u32 %v64, 2147483648
    %v76 = vsel %vm74, %v75, %v73
    %v77 = vmul.f32 %v57, %v57
    %v78 = vmul.f32 %v58, %v58
    %v79 = vadd.f32 %v77, %v78
    %80 = vadd.xlane.f32.xlu0 %v79
    %v81 = vpop.xlane.xlu0 %80
    %v82 = vmul.f32 %v81, 0.003921569
    %v83 = vrsqrt.pop %v82
    %v84 = vmul.f32 %v83, %v82
    %v85 = vmul.f32 %v84, %v83
    %v86 = vmul.f32 0.5, %v85
    %v87 = vsub.f32 1.5, %v86
    %v88 = vmul.f32 %v83, %v87
    %v89 = vmul.f32 %v82, %v88
    %vm90 = vcmp.eq.f32.partialorder %v82, inf
    %v91 = vsel %vm90, %v82, %v89
    %vm92 = vcmp.eq.f32.partialorder %v82, 0.0
    %v93 = vand.u32 %v82, 2147483648
    %v94 = vsel %vm92, %v93, %v91
    %v95 = vadd.f32 %v76, 1e-05
    %v96 = vrcp.pop %v95
    %v97 = vmul.f32 %v95, %v96
    %v98 = vsub.f32 1.0, %v97
    %v99 = vmul.f32 %v96, %v98
    %v100 = vadd.f32 %v96, %v99
    %vm101 = vweird.f32 %v95
    %vm102 = vweird.f32 %v96
    %vm103 = vmor %vm101, %vm102
    %v104 = vsel %vm103, %v96, %v100
    %v105 = vand.u32 2147483647, %v95
    %vm106 = vcmp.eq.f32.partialorder %v105, 8.507059e+37
    %v107 = vand.u32 %v95, 2147483648
    %v108 = vor.u32 1.1754944e-38, %v107
    %v109 = vsel %vm106, %v108, %v104
    %v110 = vmul.f32 %v94, %v109
    %v111 = vadd.f32 %v94, 1e-05
    %v112 = vrcp.pop %v111
    %v113 = vmul.f32 %v111, %v112
    %v114 = vsub.f32 1.0, %v113
    %v115 = vmul.f32 %v112, %v114
    %v116 = vadd.f32 %v112, %v115
    %vm117 = vweird.f32 %v111
    %vm118 = vweird.f32 %v112
    %vm119 = vmor %vm117, %vm118
    %v120 = vsel %vm119, %v112, %v116
    %v121 = vand.u32 2147483647, %v111
    %vm122 = vcmp.eq.f32.partialorder %v121, 8.507059e+37
    %v123 = vand.u32 %v111, 2147483648
    %v124 = vor.u32 1.1754944e-38, %v123
    %v125 = vsel %vm122, %v124, %v120
    %v126 = vmul.f32 %v76, %v125
    %v127 = vmul.f32 %v55, %v110
    %v128 = vmul.f32 %v56, %v110
    %v129 = vadd.f32 %v127, %v54
    %v130 = vadd.f32 %v128, %v54
    %131 = vst [vmem:[#allocation7] sm:$0xff] %v129
    %132 = vst [vmem:[#allocation7 + $0x8] sm:$0xff] %v130
    %v133 = vmul.f32 %v57, %v126
    %v134 = vmul.f32 %v58, %v126
    %v135 = vadd.f32 %v133, %v50
    %v136 = vadd.f32 %v134, %v50
    %137 = vst [vmem:[#allocation8] sm:$0xff] %v135
    %138 = vst [vmem:[#allocation8 + $0x8] sm:$0xff] %v136
    // Predicated region
    $region18: #{tpu_custom_call.1} parent=1 // pred_check
      _
    $region19: #{tpu_custom_call.1} parent=1 // pred_check_branch
      %140 = sbr.rel (0) target = $region21
    $region20: #{tpu_custom_call.1} parent=1 // pred_region
      %142 = vsyncadd [#allocation4], 0
      %s144 = sshll.u32 [#allocation7], 4
      %s145 = int_to_ptr.vmem [resolvable:$true] %s144
      %s146 = sshll.u32 %s2, 4
      %s147 = int_to_ptr.hbm [resolvable:$true] %s146
      %149 = dma.vmem_to_hbm [thread:$0]  %s145, 256, %s147, [#allocation4]
    $region21: #{tpu_custom_call.1} parent=1 // pred_fallthru
      _
    // Predicated region
    $region22: #{tpu_custom_call.1} parent=1 // pred_check
      _
    $region23: #{tpu_custom_call.1} parent=1 // pred_check_branch
      %151 = sbr.rel (0) target = $region25
    $region24: #{tpu_custom_call.1} parent=1 // pred_region
      %153 = vsyncadd [#allocation9], 0
      %s155 = sshll.u32 [#allocation8], 4
      %s156 = int_to_ptr.vmem [resolvable:$true] %s155
      %s157 = sshll.u32 %s3, 4
      %s158 = int_to_ptr.hbm [resolvable:$true] %s157
      %160 = dma.vmem_to_hbm [thread:$0]  %s156, 256, %s158, [#allocation9]
    $region25: #{tpu_custom_call.1} parent=1 // pred_fallthru
      _
    // Predicated region
    $region26: #{tpu_custom_call.1} parent=1 // pred_check
      _
    $region27: #{tpu_custom_call.1} parent=1 // pred_check_branch
      %162 = sbr.rel (0) target = $region29
    $region28: #{tpu_custom_call.1} parent=1 // pred_region
      %164 = dma.done [#allocation4], 256
    $region29: #{tpu_custom_call.1} parent=1 // pred_fallthru
      _
    // Predicated region
    $region30: #{tpu_custom_call.1} parent=1 // pred_check
      _
    $region31: #{tpu_custom_call.1} parent=1 // pred_check_branch
      %166 = sbr.rel (0) target = $region33
    $region32: #{tpu_custom_call.1} parent=1 // pred_region
      %168 = dma.done [#allocation9], 256
    $region33: #{tpu_custom_call.1} parent=1 // pred_fallthru
      _
    %169 = vsyncpa [#allocation3], 1
    %170 = vsyncpa [#allocation6], 1
    %171 = vsyncpa [#allocation4], 1
    %172 = vsyncpa [#allocation9], 1

</llo_original>
